<compile_context>
chip_gen: v6e
topology: v6e:2x2x1
jax: 0.10.0
libtpu: 0.0.40
codegen_flags: <defaults>
</compile_context>

<pallas_src>
import jax
import jax.numpy as jnp
from jax.experimental import pallas as pl
from jax.experimental.pallas import tpu as pltpu


_H1, _H2, _H3 = 128, 64, 32
_LANES = 128


def _round_up(n, m):
    return (n + m - 1) // m * m


def _value_net_kernel(x_ref, w1_ref, w23_ref, rest_ref, o_ref):
    # rest_ref rows (f32): 0 = b1, 1 = b2 (zero-padded), 2 = b3 (zero-padded),
    #                      3 = w4 as a row vector (zero-padded), 4 = b4 (broadcast).
    b1 = rest_ref[0:1, :]
    b2 = rest_ref[1:2, :]
    b3 = rest_ref[2:3, :]
    w4 = rest_ref[3:4, :]
    b4 = rest_ref[4:5, 0:1]

    # bf16 MXU operands, f32 accumulation, f32 bias add + relu.
    x = x_ref[...].astype(jnp.bfloat16)
    h = jnp.maximum(
        jnp.dot(x, w1_ref[...], preferred_element_type=jnp.float32) + b1, 0.0)
    h = jnp.maximum(
        jnp.dot(h.astype(jnp.bfloat16), w23_ref[0],
                preferred_element_type=jnp.float32) + b2, 0.0)
    h = jnp.maximum(
        jnp.dot(h.astype(jnp.bfloat16), w23_ref[1],
                preferred_element_type=jnp.float32) + b3, 0.0)

    # Final 32 -> 1 layer: an N=1 MXU matmul would use <1% of the MXU and still
    # pay full push/pop latency, so do it on the VPU + lane reduction (f32).
    v = jnp.sum(h * w4, axis=-1, keepdims=True) + b4
    o_ref[...] = jnp.maximum(v, 0.0).astype(o_ref.dtype)


def pack_value_net_params(params):
    """Pack the 8 per-layer tensors into 3 DMA-friendly buffers.

    Weights that feed the MXU (w1, w2, w3) are stored in bf16; biases, the final
    32->1 weight row and b4 stay f32.
    """
    f32, bf16 = jnp.float32, jnp.bfloat16
    w1 = params["w1"].astype(bf16)                                          # (S, 128)

    w2 = jnp.zeros((_H1, _LANES), f32).at[:, :_H2].set(
        params["w2"].astype(f32)).astype(bf16)
    w3 = jnp.zeros((_LANES, _LANES), f32).at[:_H2, :_H3].set(
        params["w3"].astype(f32)).astype(bf16)
    w23 = jnp.stack([w2, w3])                                               # (2,128,128)

    rest = jnp.zeros((8, _LANES), f32)
    rest = rest.at[0, :].set(params["b1"].reshape(-1).astype(f32))
    rest = rest.at[1, :_H2].set(params["b2"].reshape(-1).astype(f32))
    rest = rest.at[2, :_H3].set(params["b3"].reshape(-1).astype(f32))
    rest = rest.at[3, :_H3].set(params["w4"].reshape(-1).astype(f32))
    rest = rest.at[4, :].set(params["b4"].astype(f32)[0, 0])                # broadcast scalar
    return w1, w23, rest


def _pick_batch_tile(B, block_rows):
    """Batch tile: multiple of 8 (16 where possible for bf16 sublane packing),
    capped by block_rows, and sized ~B/2 so the grid has >=2 'parallel' steps
    (v7x has 2 TensorCores; no effect on v5e/v6e)."""
    if B <= 8:
        return B                               # single block == full array rows
    tb_cap = (B // 8) * 8                      # largest multiple of 8 not exceeding B
    tb_target = max(16, _round_up(pl.cdiv(B, 2), 16))
    return min(block_rows, tb_cap, tb_target)


def value_net_forward(x, packed_params, *, block_rows=1024):
    """x: (B, state_dim) f32. packed_params: output of pack_value_net_params."""
    w1, w23, rest = packed_params
    B, S = x.shape
    assert w1.shape == (S, _H1), (w1.shape, S)

    tb = _pick_batch_tile(B, block_rows)
    grid = (pl.cdiv(B, tb),)                   # no wrapper-side padding of x

    flops = 2 * B * (S * _H1 + _H1 * _H2 + _H2 * _H3 + _H3 * 1)
    bytes_accessed = 4 * B * S + 2 * (w1.size + w23.size) + 4 * rest.size + 4 * B
    cost = pl.CostEstimate(flops=flops, transcendentals=0,
                           bytes_accessed=bytes_accessed)

    out = pl.pallas_call(
        _value_net_kernel,
        grid=grid,
        in_specs=[
            pl.BlockSpec((tb, S), lambda i: (i, 0)),                  # x: streamed (f32)
            pl.BlockSpec((S, _H1), lambda i: (0, 0)),                 # w1: resident (bf16)
            pl.BlockSpec((2, _LANES, _LANES), lambda i: (0, 0, 0)),   # w2/w3: resident (bf16)
            pl.BlockSpec((8, _LANES), lambda i: (0, 0)),              # biases+w4: resident (f32)
        ],
        out_specs=pl.BlockSpec((tb, 1), lambda i: (i, 0)),
        out_shape=jax.ShapeDtypeStruct((B, 1), jnp.float32),
        compiler_params=pltpu.CompilerParams(
            dimension_semantics=("parallel",)),
        cost_estimate=cost,
    )(x, w1, w23, rest)
    return out


def init_value_net_params(key, state_dim):
    """Deterministic init; mirrors nn.Linear's U(-1/sqrt(fan_in), 1/sqrt(fan_in))."""
    dims = [(state_dim, _H1), (_H1, _H2), (_H2, _H3), (_H3, 1)]
    params = {}
    for i, (fan_in, fan_out) in enumerate(dims, start=1):
        key, kw, kb = jax.random.split(key, 3)
        bound = 1.0 / jnp.sqrt(jnp.float32(fan_in))
        # stored as (in, out) — transposed relative to PyTorch's (out, in)
        params[f"w{i}"] = jax.random.uniform(
            kw, (fan_in, fan_out), jnp.float32, minval=-bound, maxval=bound)
        params[f"b{i}"] = jax.random.uniform(
            kb, (1, fan_out), jnp.float32, minval=-bound, maxval=bound)
    return params


def value_net_reference(x, params):
    """Plain-JAX f32 reference (matches the PyTorch forward)."""
    h = jnp.maximum(x @ params["w1"] + params["b1"], 0.0)
    h = jnp.maximum(h @ params["w2"] + params["b2"], 0.0)
    h = jnp.maximum(h @ params["w3"] + params["b3"], 0.0)
    return jnp.maximum(h @ params["w4"] + params["b4"], 0.0)


if __name__ == "__main__":
    key = jax.random.PRNGKey(0)
    k_params, k_x = jax.random.split(key)

    state_dim = 32
    params = init_value_net_params(k_params, state_dim)
    packed = pack_value_net_params(params)

    # Small batch (single grid step), an evenly tiled batch (2 grid steps, weights
    # resident, x/out streamed), and a ragged batch (tail block partially OOB,
    # exercising the no-pad cdiv grid path).
    for batch in (8, 512, 500):
        k_x, k = jax.random.split(k_x)
        x = jax.random.normal(k, (batch, state_dim), dtype=jnp.float32)

        out = jax.block_until_ready(value_net_forward(x, packed))
        ref = value_net_reference(x, params)

        assert out.shape == (batch, 1), out.shape
        # bf16 matmul inputs (f32 accumulation) => loosened tolerance vs f32 ref.
        assert jnp.allclose(out, ref, atol=2e-2, rtol=2e-2), f"mismatch at B={batch}"

    print("KERNEL_OK")
</pallas_src>

<mosaic_0001>
module attributes {stable_mosaic.version = 11 : i64} {
  func.func @_value_net_kernel(%arg0: i32, %arg1: memref<8x32xf32, #tpu.memory_space<vmem>>, %arg2: memref<32x128xbf16, #tpu.memory_space<vmem>>, %arg3: memref<2x128x128xbf16, #tpu.memory_space<vmem>>, %arg4: memref<8x128xf32, #tpu.memory_space<vmem>>, %arg5: memref<8x1xf32, #tpu.memory_space<vmem>>) attributes {dimension_semantics = [#tpu.dimension_semantics<parallel>], iteration_bounds = array<i64: 1>, scalar_prefetch = 0 : i64, scratch_operands = 0 : i64, tpu.core_type = #tpu.core_type<tc>, window_params = [{transform_indices = @transform_0, window_bounds = array<i64: 8, 32>}, {pipeline_mode = #tpu.pipeline_mode<synchronous>, transform_indices = @transform_1, window_bounds = array<i64: 32, 128>}, {pipeline_mode = #tpu.pipeline_mode<synchronous>, transform_indices = @transform_2, window_bounds = array<i64: 2, 128, 128>}, {pipeline_mode = #tpu.pipeline_mode<synchronous>, transform_indices = @transform_3, window_bounds = array<i64: 8, 128>}, {transform_indices = @transform_4, window_bounds = array<i64: 8, 1>}]} {
    %c0 = arith.constant 0 : index
    %c0_0 = arith.constant 0 : index
    %0 = vector.load %arg4[%c0, %c0_0] : memref<8x128xf32, #tpu.memory_space<vmem>>, vector<1x128xf32>
    %c1 = arith.constant 1 : index
    %c0_1 = arith.constant 0 : index
    %1 = vector.load %arg4[%c1, %c0_1] : memref<8x128xf32, #tpu.memory_space<vmem>>, vector<1x128xf32>
    %c2 = arith.constant 2 : index
    %c0_2 = arith.constant 0 : index
    %2 = vector.load %arg4[%c2, %c0_2] : memref<8x128xf32, #tpu.memory_space<vmem>>, vector<1x128xf32>
    %c3 = arith.constant 3 : index
    %c0_3 = arith.constant 0 : index
    %3 = vector.load %arg4[%c3, %c0_3] : memref<8x128xf32, #tpu.memory_space<vmem>>, vector<1x128xf32>
    %c4 = arith.constant 4 : index
    %c0_4 = arith.constant 0 : index
    %4 = vector.load %arg4[%c4, %c0_4] : memref<8x128xf32, #tpu.memory_space<vmem>>, vector<1x1xf32>
    %c0_5 = arith.constant 0 : index
    %c0_6 = arith.constant 0 : index
    %5 = vector.load %arg1[%c0_5, %c0_6] : memref<8x32xf32, #tpu.memory_space<vmem>>, vector<8x32xf32>
    %6 = arith.truncf %5 : vector<8x32xf32> to vector<8x32xbf16>
    %c0_7 = arith.constant 0 : index
    %c0_8 = arith.constant 0 : index
    %7 = vector.load %arg2[%c0_7, %c0_8] : memref<32x128xbf16, #tpu.memory_space<vmem>>, vector<32x128xbf16>
    %cst = arith.constant dense<0.000000e+00> : vector<8x128xf32>
    %8 = tpu.matmul %6, %7, %cst {dimension_numbers = #tpu.dot_dimension_numbers<[1], [0], [0], [1], [0, 0, 1, 1], [], []>} : vector<8x32xbf16>, vector<32x128xbf16>, vector<8x128xf32> -> vector<8x128xf32>
    %9 = vector.broadcast %0 : vector<1x128xf32> to vector<8x128xf32>
    %10 = arith.addf %8, %9 : vector<8x128xf32>
    %cst_9 = arith.constant 0.000000e+00 : f32
    %11 = vector.broadcast %cst_9 : f32 to vector<8x128xf32>
    %12 = arith.maximumf %10, %11 : vector<8x128xf32>
    %13 = arith.truncf %12 : vector<8x128xf32> to vector<8x128xbf16>
    %c0_10 = arith.constant 0 : index
    %c0_11 = arith.constant 0 : index
    %c0_12 = arith.constant 0 : index
    %14 = vector.load %arg3[%c0_10, %c0_11, %c0_12] : memref<2x128x128xbf16, #tpu.memory_space<vmem>>, vector<1x128x128xbf16>
    %15 = vector.shape_cast %14 : vector<1x128x128xbf16> to vector<128x128xbf16>
    %cst_13 = arith.constant dense<0.000000e+00> : vector<8x128xf32>
    %16 = tpu.matmul %13, %15, %cst_13 {dimension_numbers = #tpu.dot_dimension_numbers<[1], [0], [0], [1], [0, 0, 1, 1], [], []>} : vector<8x128xbf16>, vector<128x128xbf16>, vector<8x128xf32> -> vector<8x128xf32>
    %17 = vector.broadcast %1 : vector<1x128xf32> to vector<8x128xf32>
    %18 = arith.addf %16, %17 : vector<8x128xf32>
    %cst_14 = arith.constant 0.000000e+00 : f32
    %19 = vector.broadcast %cst_14 : f32 to vector<8x128xf32>
    %20 = arith.maximumf %18, %19 : vector<8x128xf32>
    %21 = arith.truncf %20 : vector<8x128xf32> to vector<8x128xbf16>
    %c1_15 = arith.constant 1 : index
    %c0_16 = arith.constant 0 : index
    %c0_17 = arith.constant 0 : index
    %22 = vector.load %arg3[%c1_15, %c0_16, %c0_17] : memref<2x128x128xbf16, #tpu.memory_space<vmem>>, vector<1x128x128xbf16>
    %23 = vector.shape_cast %22 : vector<1x128x128xbf16> to vector<128x128xbf16>
    %cst_18 = arith.constant dense<0.000000e+00> : vector<8x128xf32>
    %24 = tpu.matmul %21, %23, %cst_18 {dimension_numbers = #tpu.dot_dimension_numbers<[1], [0], [0], [1], [0, 0, 1, 1], [], []>} : vector<8x128xbf16>, vector<128x128xbf16>, vector<8x128xf32> -> vector<8x128xf32>
    %25 = vector.broadcast %2 : vector<1x128xf32> to vector<8x128xf32>
    %26 = arith.addf %24, %25 : vector<8x128xf32>
    %cst_19 = arith.constant 0.000000e+00 : f32
    %27 = vector.broadcast %cst_19 : f32 to vector<8x128xf32>
    %28 = arith.maximumf %26, %27 : vector<8x128xf32>
    %29 = vector.broadcast %3 : vector<1x128xf32> to vector<8x128xf32>
    %30 = arith.mulf %28, %29 : vector<8x128xf32>
    %cst_20 = arith.constant dense<0.000000e+00> : vector<8xf32>
    %31 = vector.multi_reduction <add>, %30, %cst_20 [1] : vector<8x128xf32> to vector<8xf32>
    %32 = vector.shape_cast %31 : vector<8xf32> to vector<8x1xf32>
    %33 = vector.broadcast %4 : vector<1x1xf32> to vector<8x1xf32>
    %34 = arith.addf %32, %33 : vector<8x1xf32>
    %cst_21 = arith.constant 0.000000e+00 : f32
    %35 = vector.broadcast %cst_21 : f32 to vector<8x1xf32>
    %36 = arith.maximumf %34, %35 : vector<8x1xf32>
    %c0_22 = arith.constant 0 : index
    %c0_23 = arith.constant 0 : index
    %37 = vector.load %arg5[%c0_22, %c0_23] : memref<8x1xf32, #tpu.memory_space<vmem>>, vector<8x1xf32>
    tpu.vector_store %arg5[%c0_22, %c0_23], %36 {strides = array<i32>} : memref<8x1xf32, #tpu.memory_space<vmem>>, vector<8x1xf32>,
    return
  }
  func.func @transform_0(%arg0: i32) -> (i32, i32) {
    %c0_i32 = arith.constant 0 : i32
    %c0_i32_0 = arith.constant 0 : i32
    return %arg0, %c0_i32 : i32, i32
  }
  func.func @transform_1(%arg0: i32) -> (i32, i32) {
    %c0_i32 = arith.constant 0 : i32
    %c0_i32_0 = arith.constant 0 : i32
    %c0_i32_1 = arith.constant 0 : i32
    return %c0_i32, %c0_i32_0 : i32, i32
  }
  func.func @transform_2(%arg0: i32) -> (i32, i32, i32) {
    %c0_i32 = arith.constant 0 : i32
    %c0_i32_0 = arith.constant 0 : i32
    %c0_i32_1 = arith.constant 0 : i32
    %c0_i32_2 = arith.constant 0 : i32
    return %c0_i32, %c0_i32_0, %c0_i32_1 : i32, i32, i32
  }
  func.func @transform_3(%arg0: i32) -> (i32, i32) {
    %c0_i32 = arith.constant 0 : i32
    %c0_i32_0 = arith.constant 0 : i32
    %c0_i32_1 = arith.constant 0 : i32
    return %c0_i32, %c0_i32_0 : i32, i32
  }
  func.func @transform_4(%arg0: i32) -> (i32, i32) {
    %c0_i32 = arith.constant 0 : i32
    %c0_i32_0 = arith.constant 0 : i32
    return %arg0, %c0_i32 : i32, i32
  }
}

</mosaic_0001>

<llo_original>
// kernel: tpu_custom_call.1
$region0: #{tpu_custom_call.1}
  #allocation0 [shape = 'u32[]', space=smem, size = 0x4, offset = 0x4, fixed_abs, tag = 'smem constant byte address 0x4 - core index']
  #allocation1 [shape = 'u32[144,128]{1,0:T(1,128)}', space=vmem, size = 0x12000, scoped, tag = 'internal scratch']
  %s0 = inlined_call_operand.hbm [shape: f32[8,32], index: 0, kind: input, shape index: {}]
  %s1 = inlined_call_operand.hbm [shape: bf16[32,128], index: 1, kind: input, shape index: {}]
  %s2 = inlined_call_operand.hbm [shape: bf16[2,128,128], index: 2, kind: input, shape index: {}]
  %s3 = inlined_call_operand.hbm [shape: f32[8,128], index: 3, kind: input, shape index: {}]
  %s4 = inlined_call_operand.vmem [shape: f32[8,1], index: 4, kind: output, shape index: {}]
  %s5 = sld [smem:[#allocation0]]
  $region42: #{tpu_custom_call.1} parent=0
    _
  %s7 = ssub.s32 1, %s5
  %s8 = scalar_select 0, %s7, %s5
  $region1: #{tpu_custom_call.1} parent=0
    #allocation2 [shape = 'u8[4096]{0}', space=vmem, size = 0x1000, scoped, tag = 'input window, operand 0, single buffered']
    #allocation3 [shape = 's32[1]{0}', space=sflag, size = 0x4, scoped, tag = 'scoped memory for tpu_custom_call.1']
    #allocation4 [shape = 'u8[8192]{0}', space=vmem, size = 0x2000, scoped, tag = 'input window, operand 1, single buffered']
    #allocation5 [shape = 's32[1]{0}', space=sflag, size = 0x4, scoped, tag = 'scoped memory for tpu_custom_call.1']
    #allocation6 [shape = 'u8[65536]{0}', space=vmem, size = 0x10000, scoped, tag = 'input window, operand 2, single buffered']
    #allocation7 [shape = 'u8[4096]{0}', space=vmem, size = 0x1000, scoped, tag = 'input window, operand 3, single buffered']
    #allocation8 [shape = 's32[1]{0}', space=sflag, size = 0x4, scoped, tag = 'scoped memory for tpu_custom_call.1']
    %9 = vsyncpa [#allocation3], 0
    %10 = vsyncpa [#allocation5], 0
    %11 = vsyncpa [#allocation8], 0
    // Predicated region
    $region2: #{tpu_custom_call.1} parent=1 // pred_check
      _
    $region3: #{tpu_custom_call.1} parent=1 // pred_check_branch
      %13 = sbr.rel (0) target = $region5
    $region4: #{tpu_custom_call.1} parent=1 // pred_region
      %s15 = ssub.s32 128, 128
      %16 = vsyncadd [#allocation3], %s15
      %s18 = sshll.u32 [#allocation2], 4
      %s19 = int_to_ptr.vmem [resolvable:$true] %s18
      %21 = dma.hbm_to_vmem [thread:$0]  %s0, 128, %s19, [#allocation3]
    $region5: #{tpu_custom_call.1} parent=1 // pred_fallthru
      _
    // Predicated region
    $region6: #{tpu_custom_call.1} parent=1 // pred_check
      _
    $region7: #{tpu_custom_call.1} parent=1 // pred_check_branch
      %23 = sbr.rel (0) target = $region9
    $region8: #{tpu_custom_call.1} parent=1 // pred_region
      %s25 = ssub.s32 256, 256
      %26 = vsyncadd [#allocation5], %s25
      %s27 = sshll.u32 [#allocation4], 4
      %s28 = int_to_ptr.vmem [resolvable:$true] %s27
      %33 = dma.hbm_to_vmem [thread:$0]  %s1, 256, %s28, [#allocation5], 64, 64, 4
    $region9: #{tpu_custom_call.1} parent=1 // pred_fallthru
      _
    // Predicated region
    $region10: #{tpu_custom_call.1} parent=1 // pred_check
      _
    $region11: #{tpu_custom_call.1} parent=1 // pred_check_branch
      %35 = sbr.rel (0) target = $region13
    $region12: #{tpu_custom_call.1} parent=1 // pred_region
      %s37 = ssub.s32 2048, 2048
      %38 = vsyncadd [#allocation5], %s37
      %s39 = sshll.u32 [#allocation6], 4
      %s40 = int_to_ptr.vmem [resolvable:$true] %s39
      %45 = dma.hbm_to_vmem [thread:$0]  %s2, 2048, %s40, [#allocation5], 64, 64, 4
    $region13: #{tpu_custom_call.1} parent=1 // pred_fallthru
      _
    // Predicated region
    $region14: #{tpu_custom_call.1} parent=1 // pred_check
      _
    $region15: #{tpu_custom_call.1} parent=1 // pred_check_branch
      %47 = sbr.rel (0) target = $region17
    $region16: #{tpu_custom_call.1} parent=1 // pred_region
      %s49 = ssub.s32 128, 128
      %50 = vsyncadd [#allocation8], %s49
      %s52 = sshll.u32 [#allocation7], 4
      %s53 = int_to_ptr.vmem [resolvable:$true] %s52
      %55 = dma.hbm_to_vmem [thread:$0]  %s3, 128, %s53, [#allocation8]
    $region17: #{tpu_custom_call.1} parent=1 // pred_fallthru
      _
    // Predicated region
    $region18: #{tpu_custom_call.1} parent=1 // pred_check
      _
    $region19: #{tpu_custom_call.1} parent=1 // pred_check_branch
      %57 = sbr.rel (0) target = $region21
    $region20: #{tpu_custom_call.1} parent=1 // pred_region
      %58 = dma.done [#allocation3], 128
    $region21: #{tpu_custom_call.1} parent=1 // pred_fallthru
      _
    // Predicated region
    $region22: #{tpu_custom_call.1} parent=1 // pred_check
      _
    $region23: #{tpu_custom_call.1} parent=1 // pred_check_branch
      %60 = sbr.rel (0) target = $region25
    $region24: #{tpu_custom_call.1} parent=1 // pred_region
      %61 = dma.done [#allocation5], 256
    $region25: #{tpu_custom_call.1} parent=1 // pred_fallthru
      _
    // Predicated region
    $region26: #{tpu_custom_call.1} parent=1 // pred_check
      _
    $region27: #{tpu_custom_call.1} parent=1 // pred_check_branch
      %63 = sbr.rel (0) target = $region29
    $region28: #{tpu_custom_call.1} parent=1 // pred_region
      %64 = dma.done [#allocation5], 2048
    $region29: #{tpu_custom_call.1} parent=1 // pred_fallthru
      _
    // Predicated region
    $region30: #{tpu_custom_call.1} parent=1 // pred_check
      _
    $region31: #{tpu_custom_call.1} parent=1 // pred_check_branch
      %66 = sbr.rel (0) target = $region33
    $region32: #{tpu_custom_call.1} parent=1 // pred_region
      %67 = dma.done [#allocation8], 128
    $region33: #{tpu_custom_call.1} parent=1 // pred_fallthru
      _
    %v69 = vld [vmem:[#allocation7] sm:$0x1]
    %v70 = vld [vmem:[#allocation7 + $0x1] sm:$0x1]
    %v71 = vld [vmem:[#allocation7 + $0x2] sm:$0x1]
    %v72 = vld [vmem:[#allocation7 + $0x3] sm:$0x1]
    %v73 = vld [vmem:[#allocation7 + $0x4] sm:$0x1]
    %v74 = vld [vmem:[#allocation2] sm:$0xff]
    %v75 = vpack.c.bf16 %v74, %v74
    %v76 = vld [vmem:[#allocation4] sm:$0xf]
    %v77 = vld [vmem:[#allocation4 + $0x4] sm:$0xf]
    %v78 = vld [vmem:[#allocation4 + $0x8] sm:$0xf]
    %v79 = vld [vmem:[#allocation4 + $0xc] sm:$0xf]
    %v80 = vlaneseq
    %v81 = vshrl.u32 %v80, 7
    %v82 = vsub.s32 0, %v81
    %v83 = vrot.slane %v69, %v82
    %v88 = vunpack.c.l.b16 %v76
    %v89 = vunpack.c.l.b16 %v77
    %v90 = vunpack.c.l.b16 %v78
    %v91 = vunpack.c.l.b16 %v79
    %v92 = vpack.c.b16 %v89, %v88
    %v93 = vpack.c.b16 %v91, %v90
    %vm96 = vcmask 261120
    %v98 = vsel %vm96, %v75, 0
    %100 = vmatprep.subr.bf16.mxu0 0
    %101 = vmatpush1.bf16.msra.mxu0 0
    %102 = vmatprep.subr.bf16.mxu0 0
    %103 = vmatpush1.bf16.msra.mxu0 0
    %104 = vmatprep.subr.bf16.mxu0 0
    %105 = vmatpush1.bf16.msra.mxu0 0
    %106 = vmatprep.subr.bf16.mxu0 0
    %107 = vmatpush1.bf16.msra.mxu0 0
    %108 = vmatprep.subr.bf16.mxu0 0
    %109 = vmatpush1.bf16.msra.mxu0 0
    %110 = vmatprep.subr.bf16.mxu0 0
    %111 = vmatpush1.bf16.msra.mxu0 0
    %112 = vmatprep.subr.bf16.mxu0 0
    %113 = vmatpush1.bf16.msra.mxu0 %v93
    %114 = vmatprep.subr.bf16.mxu0 0
    %115 = vmatpush1.bf16.msra.mxu0 %v92
    %116 = vmatprep.subr.bf16.mxu0 0
    %117 = vmatpush2.bf16.msra.mxu0 0
    %118 = vmatprep.subr.bf16.mxu0 0
    %119 = vmatpush2.bf16.msra.mxu0 0
    %120 = vmatprep.subr.bf16.mxu0 0
    %121 = vmatpush2.bf16.msra.mxu0 0
    %122 = vmatprep.subr.bf16.mxu0 0
    %123 = vmatpush2.bf16.msra.mxu0 0
    %124 = vmatprep.subr.bf16.mxu0 0
    %125 = vmatpush2.bf16.msra.mxu0 0
    %126 = vmatprep.subr.bf16.mxu0 0
    %127 = vmatpush2.bf16.msra.mxu0 0
    %128 = vmatprep.subr.bf16.mxu0 0
    %129 = vmatpush2.bf16.msra.mxu0 0
    %130 = vmatprep.subr.bf16.mxu0 0
    %131 = vmatpush2.bf16.msra.mxu0 0
    %132 = vmatprep.mubr.bf16.mxu0 0
    %133 = vmatmul.mubr.bf16.gmra.mxu0 %v98
    %v134 = vpop.f32.mrf.mxu0
    %v135 = vadd.f32 %v83, %v134
    %v136 = vpop.f32.mrf.mxu0
    %v137 = vpop.f32.mrf.mxu0
    %v138 = vpop.f32.mrf.mxu0
    %139 = vdwg.mxu0
    %v140 = vmax.f32 %v135, 0.0
    %v141 = vpack.c.bf16 %v140, %v140
    %v142 = vld [vmem:[#allocation6] sm:$0xf]
    %v143 = vld [vmem:[#allocation6 + $0x4] sm:$0xf]
    %v144 = vld [vmem:[#allocation6 + $0x8] sm:$0xf]
    %v145 = vld [vmem:[#allocation6 + $0xc] sm:$0xf]
    %v146 = vld [vmem:[#allocation6 + $0x10] sm:$0xf]
    %v147 = vld [vmem:[#allocation6 + $0x14] sm:$0xf]
    %v148 = vld [vmem:[#allocation6 + $0x18] sm:$0xf]
    %v149 = vld [vmem:[#allocation6 + $0x1c] sm:$0xf]
    %v150 = vld [vmem:[#allocation6 + $0x20] sm:$0xf]
    %v151 = vld [vmem:[#allocation6 + $0x24] sm:$0xf]
    %v152 = vld [vmem:[#allocation6 + $0x28] sm:$0xf]
    %v153 = vld [vmem:[#allocation6 + $0x2c] sm:$0xf]
    %v154 = vld [vmem:[#allocation6 + $0x30] sm:$0xf]
    %v155 = vld [vmem:[#allocation6 + $0x34] sm:$0xf]
    %v156 = vld [vmem:[#allocation6 + $0x38] sm:$0xf]
    %v157 = vld [vmem:[#allocation6 + $0x3c] sm:$0xf]
    %v158 = vlaneseq
    %v159 = vshrl.u32 %v158, 7
    %v160 = vsub.s32 0, %v159
    %v161 = vrot.slane %v70, %v160
    %v178 = vunpack.c.l.b16 %v142
    %v179 = vunpack.c.l.b16 %v143
    %v180 = vunpack.c.l.b16 %v144
    %v181 = vunpack.c.l.b16 %v145
    %v182 = vunpack.c.l.b16 %v146
    %v183 = vunpack.c.l.b16 %v147
    %v184 = vunpack.c.l.b16 %v148
    %v185 = vunpack.c.l.b16 %v149
    %v186 = vunpack.c.l.b16 %v150
    %v187 = vunpack.c.l.b16 %v151
    %v188 = vunpack.c.l.b16 %v152
    %v189 = vunpack.c.l.b16 %v153
    %v190 = vunpack.c.l.b16 %v154
    %v191 = vunpack.c.l.b16 %v155
    %v192 = vunpack.c.l.b16 %v156
    %v193 = vunpack.c.l.b16 %v157
    %v194 = vpack.c.b16 %v179, %v178
    %v195 = vpack.c.b16 %v181, %v180
    %v196 = vpack.c.b16 %v183, %v182
    %v197 = vpack.c.b16 %v185, %v184
    %v198 = vpack.c.b16 %v187, %v186
    %v199 = vpack.c.b16 %v189, %v188
    %v200 = vpack.c.b16 %v191, %v190
    %v201 = vpack.c.b16 %v193, %v192
    %210 = vmatprep.subr.bf16.mxu0 0
    %211 = vmatpush1.bf16.msra.mxu0 %v201
    %212 = vmatprep.subr.bf16.mxu0 0
    %213 = vmatpush1.bf16.msra.mxu0 %v200
    %214 = vmatprep.subr.bf16.mxu0 0
    %215 = vmatpush1.bf16.msra.mxu0 %v199
    %216 = vmatprep.subr.bf16.mxu0 0
    %217 = vmatpush1.bf16.msra.mxu0 %v198
    %218 = vmatprep.subr.bf16.mxu0 0
    %219 = vmatpush1.bf16.msra.mxu0 %v197
    %220 = vmatprep.subr.bf16.mxu0 0
    %221 = vmatpush1.bf16.msra.mxu0 %v196
    %222 = vmatprep.subr.bf16.mxu0 0
    %223 = vmatpush1.bf16.msra.mxu0 %v195
    %224 = vmatprep.subr.bf16.mxu0 0
    %225 = vmatpush1.bf16.msra.mxu0 %v194
    %226 = vmatprep.subr.bf16.mxu0 0
    %227 = vmatpush2.bf16.msra.mxu0 0
    %228 = vmatprep.subr.bf16.mxu0 0
    %229 = vmatpush2.bf16.msra.mxu0 0
    %230 = vmatprep.subr.bf16.mxu0 0
    %231 = vmatpush2.bf16.msra.mxu0 0
    %232 = vmatprep.subr.bf16.mxu0 0
    %233 = vmatpush2.bf16.msra.mxu0 0
    %234 = vmatprep.subr.bf16.mxu0 0
    %235 = vmatpush2.bf16.msra.mxu0 0
    %236 = vmatprep.subr.bf16.mxu0 0
    %237 = vmatpush2.bf16.msra.mxu0 0
    %238 = vmatprep.subr.bf16.mxu0 0
    %239 = vmatpush2.bf16.msra.mxu0 0
    %240 = vmatprep.subr.bf16.mxu0 0
    %241 = vmatpush2.bf16.msra.mxu0 0
    %242 = vmatprep.mubr.bf16.mxu0 0
    %243 = vmatmul.mubr.bf16.gmra.mxu0 %v141
    %v244 = vpop.f32.mrf.mxu0
    %v245 = vadd.f32 %v161, %v244
    %v246 = vpop.f32.mrf.mxu0
    %v247 = vpop.f32.mrf.mxu0
    %v248 = vpop.f32.mrf.mxu0
    %249 = vdwg.mxu0
    %v250 = vmax.f32 %v245, 0.0
    %v251 = vpack.c.bf16 %v250, %v250
    %s252 = scalar_lea.vmem [#allocation6], 64
    %v253 = vld [vmem:[%s252] sm:$0xf]
    %v254 = vld [vmem:[%s252 + $0x4] sm:$0xf]
    %v255 = vld [vmem:[%s252 + $0x8] sm:$0xf]
    %v256 = vld [vmem:[%s252 + $0xc] sm:$0xf]
    %v257 = vld [vmem:[%s252 + $0x10] sm:$0xf]
    %v258 = vld [vmem:[%s252 + $0x14] sm:$0xf]
    %v259 = vld [vmem:[%s252 + $0x18] sm:$0xf]
    %v260 = vld [vmem:[%s252 + $0x1c] sm:$0xf]
    %v261 = vld [vmem:[%s252 + $0x20] sm:$0xf]
    %v262 = vld [vmem:[%s252 + $0x24] sm:$0xf]
    %v263 = vld [vmem:[%s252 + $0x28] sm:$0xf]
    %v264 = vld [vmem:[%s252 + $0x2c] sm:$0xf]
    %v265 = vld [vmem:[%s252 + $0x30] sm:$0xf]
    %v266 = vld [vmem:[%s252 + $0x34] sm:$0xf]
    %v267 = vld [vmem:[%s252 + $0x38] sm:$0xf]
    %v268 = vld [vmem:[%s252 + $0x3c] sm:$0xf]
    %v269 = vlaneseq
    %v270 = vshrl.u32 %v269, 7
    %v271 = vsub.s32 0, %v270
    %v272 = vrot.slane %v71, %v271
    %v289 = vunpack.c.l.b16 %v253
    %v290 = vunpack.c.l.b16 %v254
    %v291 = vunpack.c.l.b16 %v255
    %v292 = vunpack.c.l.b16 %v256
    %v293 = vunpack.c.l.b16 %v257
    %v294 = vunpack.c.l.b16 %v258
    %v295 = vunpack.c.l.b16 %v259
    %v296 = vunpack.c.l.b16 %v260
    %v297 = vunpack.c.l.b16 %v261
    %v298 = vunpack.c.l.b16 %v262
    %v299 = vunpack.c.l.b16 %v263
    %v300 = vunpack.c.l.b16 %v264
    %v301 = vunpack.c.l.b16 %v265
    %v302 = vunpack.c.l.b16 %v266
    %v303 = vunpack.c.l.b16 %v267
    %v304 = vunpack.c.l.b16 %v268
    %v305 = vpack.c.b16 %v290, %v289
    %v306 = vpack.c.b16 %v292, %v291
    %v307 = vpack.c.b16 %v294, %v293
    %v308 = vpack.c.b16 %v296, %v295
    %v309 = vpack.c.b16 %v298, %v297
    %v310 = vpack.c.b16 %v300, %v299
    %v311 = vpack.c.b16 %v302, %v301
    %v312 = vpack.c.b16 %v304, %v303
    %321 = vmatprep.subr.bf16.mxu0 0
    %322 = vmatpush1.bf16.msra.mxu0 %v312
    %323 = vmatprep.subr.bf16.mxu0 0
    %324 = vmatpush1.bf16.msra.mxu0 %v311
    %325 = vmatprep.subr.bf16.mxu0 0
    %326 = vmatpush1.bf16.msra.mxu0 %v310
    %327 = vmatprep.subr.bf16.mxu0 0
    %328 = vmatpush1.bf16.msra.mxu0 %v309
    %329 = vmatprep.subr.bf16.mxu0 0
    %330 = vmatpush1.bf16.msra.mxu0 %v308
    %331 = vmatprep.subr.bf16.mxu0 0
    %332 = vmatpush1.bf16.msra.mxu0 %v307
    %333 = vmatprep.subr.bf16.mxu0 0
    %334 = vmatpush1.bf16.msra.mxu0 %v306
    %335 = vmatprep.subr.bf16.mxu0 0
    %336 = vmatpush1.bf16.msra.mxu0 %v305
    %337 = vmatprep.subr.bf16.mxu0 0
    %338 = vmatpush2.bf16.msra.mxu0 0
    %339 = vmatprep.subr.bf16.mxu0 0
    %340 = vmatpush2.bf16.msra.mxu0 0
    %341 = vmatprep.subr.bf16.mxu0 0
    %342 = vmatpush2.bf16.msra.mxu0 0
    %343 = vmatprep.subr.bf16.mxu0 0
    %344 = vmatpush2.bf16.msra.mxu0 0
    %345 = vmatprep.subr.bf16.mxu0 0
    %346 = vmatpush2.bf16.msra.mxu0 0
    %347 = vmatprep.subr.bf16.mxu0 0
    %348 = vmatpush2.bf16.msra.mxu0 0
    %349 = vmatprep.subr.bf16.mxu0 0
    %350 = vmatpush2.bf16.msra.mxu0 0
    %351 = vmatprep.subr.bf16.mxu0 0
    %352 = vmatpush2.bf16.msra.mxu0 0
    %353 = vmatprep.mubr.bf16.mxu0 0
    %354 = vmatmul.mubr.bf16.gmra.mxu0 %v251
    %v355 = vpop.f32.mrf.mxu0
    %v356 = vadd.f32 %v272, %v355
    %v357 = vpop.f32.mrf.mxu0
    %v358 = vpop.f32.mrf.mxu0
    %v359 = vpop.f32.mrf.mxu0
    %360 = vdwg.mxu0
    %v361 = vmax.f32 %v356, 0.0
    %v362 = vlaneseq
    %v363 = vshrl.u32 %v362, 7
    %v364 = vsub.s32 0, %v363
    %v365 = vrot.slane %v72, %v364
    %v366 = vmul.f32 %v361, %v365
    %367 = vadd.xlane.f32.xlu0 %v366
    %v368 = vpop.xlane.xlu0 %367
    %v369 = vlaneseq
    %v370 = vshrl.u32 %v369, 7
    %v371 = vsub.s32 0, %v370
    %v372 = vrot.slane %v73, %v371
    %v373 = vadd.f32 %v368, %v372
    %v374 = vmax.f32 %v373, 0.0
    %vm375 = vcmask 7168
    %376 = vst.msk [vmem:[%s4] sm:$0xff] %vm375, %v374
    // Predicated region
    $region34: #{tpu_custom_call.1} parent=1 // pred_check
      _
    $region35: #{tpu_custom_call.1} parent=1 // pred_check_branch
      %378 = sbr.rel (0) target = $region37
    $region36: #{tpu_custom_call.1} parent=1 // pred_region
      _
    $region37: #{tpu_custom_call.1} parent=1 // pred_fallthru
      _
    // Predicated region
    $region38: #{tpu_custom_call.1} parent=1 // pred_check
      _
    $region39: #{tpu_custom_call.1} parent=1 // pred_check_branch
      %380 = sbr.rel (0) target = $region41
    $region40: #{tpu_custom_call.1} parent=1 // pred_region
      _
    $region41: #{tpu_custom_call.1} parent=1 // pred_fallthru
      _
    %381 = vsyncpa [#allocation3], 1
    %382 = vsyncpa [#allocation5], 1
    %383 = vsyncpa [#allocation8], 1

</llo_original>
